<compile_context>
chip_gen: v6e
topology: v6e:2x2x1
jax: 0.10.0
libtpu: 0.0.40
codegen_flags: <defaults>
</compile_context>

<pallas_src>
import functools

import jax
import jax.numpy as jnp
from jax.experimental import pallas as pl
from jax.experimental.pallas import tpu as pltpu

_LANE = 128
_SUBLANE = 8
_MAX_TILE_M = 512  # (5, 512, 128) f32 block ~= 1.3 MiB per input; well in VMEM.

# The reference's get_sigma() clamps w,h with its *own* default eps=1e-7 (the
# module-level eps is not forwarded to it), so we hardcode the same clamp.
_SIGMA_CLAMP_EPS = 1e-7


def _refined_recip(x):
    """EUP approx reciprocal + one Newton step: ~f32-exact, 1 EUP + 2 VALU ops
    (a full f32 divide costs ~6-8 VALU ops and would bind on v7x)."""
    r = pl.reciprocal(x, approx=True)
    return r * (2.0 - x * r)


def _kld_tile_loss(pred_ref, tgt_ref, *, tau, inv_alpha_sq, sqrt, clamp_eps):
    """Per-box KLD loss for one (tile_m, 128) tile.

    pred_ref / tgt_ref: (5, tile_m, 128) VMEM refs, planes = [x, y, w, h, theta].
    Returns an f32 (tile_m, 128) loss tile.
    """
    f32 = jnp.float32
    xp = pred_ref[0].astype(f32)
    yp = pred_ref[1].astype(f32)
    wp = jnp.maximum(pred_ref[2].astype(f32), clamp_eps)
    hp = jnp.maximum(pred_ref[3].astype(f32), clamp_eps)
    thp = pred_ref[4].astype(f32)

    xt = tgt_ref[0].astype(f32)
    yt = tgt_ref[1].astype(f32)
    wt = jnp.maximum(tgt_ref[2].astype(f32), clamp_eps)
    ht = jnp.maximum(tgt_ref[3].astype(f32), clamp_eps)
    tht = tgt_ref[4].astype(f32)

    def cov(w, h, theta):
        # Sigma = R diag((w/2)^2, (h/2)^2) R^T via the double-angle form.
        a = 0.25 * w * w
        c = 0.25 * h * h
        half_sum = 0.5 * (a + c)
        half_diff = 0.5 * (a - c)
        cos2 = jnp.cos(2.0 * theta)
        sin2 = jnp.sin(2.0 * theta)
        # s11, s12, s22, det (det is rotation-invariant: a*c, always > 0).
        return (half_sum + half_diff * cos2, half_diff * sin2,
                half_sum - half_diff * cos2, a * c)

    p11, p12, p22, pdet = cov(wp, hp, thp)
    t11, t12, t22, _ = cov(wt, ht, tht)

    # 0.5 * Sigma_p^{-1}: the shared 1/2 of the Mahalanobis and trace terms is
    # folded into the inverse determinant once.
    inv_det_half = 0.5 * _refined_recip(pdet)
    ih11 = p22 * inv_det_half
    ih12 = -(p12 * inv_det_half)
    ih22 = p11 * inv_det_half

    dx = xp - xt
    dy = yp - yt
    # 0.5 * dxy^T Sigma_p^{-1} dxy (expanded quadratic form).
    xy_distance = ih11 * dx * dx + 2.0 * (ih12 * dx * dy) + ih22 * dy * dy
    # 0.5 * tr(Sigma_p^{-1} Sigma_t)
    whr_distance = ih11 * t11 + 2.0 * (ih12 * t12) + ih22 * t22
    # 0.5*(log|Sigma_p| - log|Sigma_t|) == log(wp*hp) - log(wt*ht)
    whr_distance = whr_distance + (jnp.log(wp * hp) - jnp.log(wt * ht)) - 1.0

    if inv_alpha_sq != 1.0:  # skip the multiply at trace time when alpha == 1
        xy_distance = xy_distance * inv_alpha_sq
    distance = xy_distance + whr_distance
    if sqrt:
        distance = jnp.sqrt(jnp.maximum(distance, 0.0))

    denom = tau + jnp.log1p(distance)
    return 1.0 - _refined_recip(denom)


def _kld_elem_kernel(pred_ref, tgt_ref, out_ref, *, tau, inv_alpha_sq, sqrt,
                     clamp_eps):
    loss = _kld_tile_loss(pred_ref, tgt_ref, tau=tau, inv_alpha_sq=inv_alpha_sq,
                          sqrt=sqrt, clamp_eps=clamp_eps)
    out_ref[...] = loss.astype(out_ref.dtype)


def _kld_sum_kernel(pred_ref, tgt_ref, out_ref, *, tau, inv_alpha_sq, sqrt,
                    clamp_eps, n_valid, tile_m):
    """Unweighted fused reduction: per-tile (8, 128) partial sums."""
    loss = _kld_tile_loss(pred_ref, tgt_ref, tau=tau, inv_alpha_sq=inv_alpha_sq,
                          sqrt=sqrt, clamp_eps=clamp_eps)
    # Mask padded boxes (their loss is 1 - 1/tau, nonzero when tau != 1).
    row = jax.lax.broadcasted_iota(jnp.int32, (tile_m, _LANE), 0)
    lane = jax.lax.broadcasted_iota(jnp.int32, (tile_m, _LANE), 1)
    box_idx = (pl.program_id(0) * tile_m + row) * _LANE + lane
    loss = jnp.where(box_idx < n_valid, loss, 0.0)
    out_ref[...] = jnp.sum(
        loss.reshape(tile_m // _SUBLANE, _SUBLANE, _LANE), axis=0)


def _kld_wsum_kernel(pred_ref, tgt_ref, w_ref, out_ref, *, tau, inv_alpha_sq,
                     sqrt, clamp_eps, tile_m):
    """Weighted fused reduction (padded weights are zero -> implicit mask)."""
    loss = _kld_tile_loss(pred_ref, tgt_ref, tau=tau, inv_alpha_sq=inv_alpha_sq,
                          sqrt=sqrt, clamp_eps=clamp_eps)
    loss = loss * w_ref[...].astype(jnp.float32)
    out_ref[...] = jnp.sum(
        loss.reshape(tile_m // _SUBLANE, _SUBLANE, _LANE), axis=0)


def _choose_tile_m(m_min):
    """Largest power-of-two tile with >=2 grid steps (v7x: 2 TCs) when
    possible and padding waste <= ~12.5%."""
    best = _SUBLANE
    t = _SUBLANE
    while t <= _MAX_TILE_M:
        m_t = pl.cdiv(m_min, t) * t
        waste_ok = (m_t - m_min) * 8 <= m_t
        multi_step = (m_t // t) >= 2 or m_min <= _SUBLANE
        if waste_ok and multi_step:
            best = t
        t *= 2
    return best


def _plan(n):
    m_min = pl.cdiv(n, _LANE)
    m_min = pl.cdiv(m_min, _SUBLANE) * _SUBLANE
    tile_m = _choose_tile_m(m_min)
    m = pl.cdiv(m_min, tile_m) * tile_m
    # TODO(synk): bucket m (e.g. to powers of two) in a training loop to limit
    # pallas_call recompiles across varying N.
    return m, tile_m


def _pack_planes(arr, n_pad, dtype):
    """(N, 5) AoS boxes -> (5, n_pad/128, 128) lane-dense SoA planes.

    Padded rows are a benign unit box so every lane produces a finite loss.
    With allow_input_fusion the pad/transpose/reshape may be fused into the
    pallas input DMA instead of materializing in HBM.
    """
    n = arr.shape[0]
    arr = arr.astype(dtype)
    pad_row = jnp.array([[0.0, 0.0, 1.0, 1.0, 0.0]], dtype=dtype)
    pad = jnp.tile(pad_row, (n_pad - n, 1))
    arr = jnp.concatenate([arr, pad], axis=0)          # (n_pad, 5)
    return arr.T.reshape(5, n_pad // _LANE, _LANE)     # (5, m, 128)


def _pack_weight(weight, n_pad):
    n = weight.shape[0]
    w = weight.astype(jnp.float32).reshape(-1)
    w = jnp.concatenate([w, jnp.zeros((n_pad - n,), jnp.float32)])
    return w.reshape(n_pad // _LANE, _LANE)


def _compiler_params(num_inputs):
    return pltpu.CompilerParams(
        dimension_semantics=("parallel",),
        allow_input_fusion=[True] * num_inputs,
        vmem_limit_bytes=32 * 1024 * 1024)


def kld_loss_forward(pred, target, weight=None, avg_factor=None,
                     reduction="mean", reduction_override=None,
                     tau=1.0, eps=1e-6, loss_weight=1.0,
                     alpha=1.0, sqrt=True, input_dtype=jnp.float32):
    """JAX/Pallas equivalent of KLDLoss.forward (weight_reduce_loss semantics).

    input_dtype=jnp.bfloat16 halves HBM read traffic (useful on v5e/v6e where
    the kernel is HBM-bound) at ~3 significant digits of coordinate precision.
    """
    assert pred.ndim == 2 and target.ndim == 2
    assert reduction_override in (None, "none", "mean", "sum")
    reduction = reduction_override if reduction_override else reduction
    n = pred.shape[0]
    assert n > 0
    # TODO(synk): the torch module's data-dependent early-exit for all-zero
    # weights ((pred * weight).sum() when not torch.any(weight > 0)) is not
    # replicated here.
    del eps  # The reference clamps w,h inside get_sigma with its own 1e-7.

    if weight is not None and weight.ndim > 1:
        assert weight.shape == pred.shape
        weight = weight.mean(-1)

    m, tile_m = _plan(n)
    n_pad = m * _LANE
    grid = (m // tile_m,)

    pred_planes = _pack_planes(pred, n_pad, input_dtype)
    tgt_planes = _pack_planes(target, n_pad, input_dtype)

    kw = dict(tau=float(tau), inv_alpha_sq=1.0 / (float(alpha) ** 2),
              sqrt=bool(sqrt), clamp_eps=_SIGMA_CLAMP_EPS)

    box_spec = pl.BlockSpec((5, tile_m, _LANE), lambda i: (0, i, 0))

    if reduction == "none":
        out = pl.pallas_call(
            functools.partial(_kld_elem_kernel, **kw),
            out_shape=jax.ShapeDtypeStruct((m, _LANE), jnp.float32),
            grid=grid,
            in_specs=[box_spec, box_spec],
            out_specs=pl.BlockSpec((tile_m, _LANE), lambda i: (i, 0)),
            compiler_params=_compiler_params(2),
        )(pred_planes, tgt_planes)
        loss = out.reshape(-1)[:n]  # row-major flatten matches pack() order
        if weight is not None:
            loss = loss * weight.astype(loss.dtype)
        return loss_weight * loss

    # mean / sum: fuse (optional) weight multiply + reduction into the kernel;
    # only tiny (grid, 8, 128) partial sums are written back to HBM.
    partial_shape = jax.ShapeDtypeStruct((grid[0], _SUBLANE, _LANE), jnp.float32)
    partial_spec = pl.BlockSpec((None, _SUBLANE, _LANE), lambda i: (i, 0, 0))

    if weight is not None:
        w_plane = _pack_weight(weight, n_pad)
        partials = pl.pallas_call(
            functools.partial(_kld_wsum_kernel, tile_m=tile_m, **kw),
            out_shape=partial_shape,
            grid=grid,
            in_specs=[box_spec, box_spec,
                      pl.BlockSpec((tile_m, _LANE), lambda i: (i, 0))],
            out_specs=partial_spec,
            compiler_params=_compiler_params(3),
        )(pred_planes, tgt_planes, w_plane)
    else:
        partials = pl.pallas_call(
            functools.partial(_kld_sum_kernel, tile_m=tile_m, n_valid=n, **kw),
            out_shape=partial_shape,
            grid=grid,
            in_specs=[box_spec, box_spec],
            out_specs=partial_spec,
            compiler_params=_compiler_params(2),
        )(pred_planes, tgt_planes)

    total = jnp.sum(partials)
    if avg_factor is None:
        loss = total / n if reduction == "mean" else total
    else:
        if reduction == "mean":
            loss = total / avg_factor
        else:
            raise ValueError('avg_factor can not be used with reduction="sum"')
    return loss_weight * loss


if __name__ == "__main__":
    key = jax.random.PRNGKey(0)
    k1, k2, k3, k4, k5, k6, k7 = jax.random.split(key, 7)
    N = 8  # number of rotated boxes, each (x, y, w, h, theta)

    xy_p = jax.random.normal(k1, (N, 2)) * 4.0
    wh_p = jnp.abs(jax.random.normal(k2, (N, 2))) + 0.5
    th_p = jax.random.uniform(k3, (N, 1), minval=-1.5, maxval=1.5)
    pred = jnp.concatenate([xy_p, wh_p, th_p], axis=-1)

    xy_t = jax.random.normal(k4, (N, 2)) * 4.0
    wh_t = jnp.abs(jax.random.normal(k5, (N, 2))) + 0.5
    th_t = jax.random.uniform(k6, (N, 1), minval=-1.5, maxval=1.5)
    target = jnp.concatenate([xy_t, wh_t, th_t], axis=-1)

    weight = jax.random.uniform(k7, (N,), minval=0.0, maxval=1.0)

    loss_none = kld_loss_forward(pred, target, reduction="none")
    loss_mean = kld_loss_forward(pred, target, reduction="mean")
    loss_wmean = kld_loss_forward(pred, target, weight=weight, reduction="mean")
    loss_none, loss_mean, loss_wmean = jax.block_until_ready(
        (loss_none, loss_mean, loss_wmean))

    assert bool(jnp.all(jnp.isfinite(loss_none)))
    assert bool(jnp.isfinite(loss_mean)) and bool(jnp.isfinite(loss_wmean))
    # Cross-check fused-reduction kernels against the elementwise kernel.
    assert jnp.allclose(loss_mean, loss_none.mean(), rtol=1e-4, atol=1e-6)
    assert jnp.allclose(loss_wmean, (loss_none * weight).mean(),
                        rtol=1e-4, atol=1e-6)
    print("KERNEL_OK")
</pallas_src>

<mosaic_0001>
module attributes {stable_mosaic.version = 11 : i64} {
  func.func @_kld_elem_kernel(%arg0: i32, %arg1: memref<5x8x128xf32, #tpu.memory_space<vmem>>, %arg2: memref<5x8x128xf32, #tpu.memory_space<vmem>>, %arg3: memref<8x128xf32, #tpu.memory_space<vmem>>) attributes {dimension_semantics = [#tpu.dimension_semantics<parallel>], iteration_bounds = array<i64: 1>, scalar_prefetch = 0 : i64, scratch_operands = 0 : i64, tpu.core_type = #tpu.core_type<tc>, window_params = [{transform_indices = @transform_0, window_bounds = array<i64: 5, 8, 128>}, {transform_indices = @transform_1, window_bounds = array<i64: 5, 8, 128>}, {transform_indices = @transform_2, window_bounds = array<i64: 8, 128>}]} {
    %c0 = arith.constant 0 : index
    %c0_0 = arith.constant 0 : index
    %c0_1 = arith.constant 0 : index
    %0 = vector.load %arg1[%c0, %c0_0, %c0_1] : memref<5x8x128xf32, #tpu.memory_space<vmem>>, vector<1x8x128xf32>
    %1 = vector.shape_cast %0 : vector<1x8x128xf32> to vector<8x128xf32>
    %c1 = arith.constant 1 : index
    %c0_2 = arith.constant 0 : index
    %c0_3 = arith.constant 0 : index
    %2 = vector.load %arg1[%c1, %c0_2, %c0_3] : memref<5x8x128xf32, #tpu.memory_space<vmem>>, vector<1x8x128xf32>
    %3 = vector.shape_cast %2 : vector<1x8x128xf32> to vector<8x128xf32>
    %c2 = arith.constant 2 : index
    %c0_4 = arith.constant 0 : index
    %c0_5 = arith.constant 0 : index
    %4 = vector.load %arg1[%c2, %c0_4, %c0_5] : memref<5x8x128xf32, #tpu.memory_space<vmem>>, vector<1x8x128xf32>
    %5 = vector.shape_cast %4 : vector<1x8x128xf32> to vector<8x128xf32>
    %cst = arith.constant 1.000000e-07 : f32
    %6 = vector.broadcast %cst : f32 to vector<8x128xf32>
    %7 = arith.maximumf %5, %6 : vector<8x128xf32>
    %c3 = arith.constant 3 : index
    %c0_6 = arith.constant 0 : index
    %c0_7 = arith.constant 0 : index
    %8 = vector.load %arg1[%c3, %c0_6, %c0_7] : memref<5x8x128xf32, #tpu.memory_space<vmem>>, vector<1x8x128xf32>
    %9 = vector.shape_cast %8 : vector<1x8x128xf32> to vector<8x128xf32>
    %cst_8 = arith.constant 1.000000e-07 : f32
    %10 = vector.broadcast %cst_8 : f32 to vector<8x128xf32>
    %11 = arith.maximumf %9, %10 : vector<8x128xf32>
    %c4 = arith.constant 4 : index
    %c0_9 = arith.constant 0 : index
    %c0_10 = arith.constant 0 : index
    %12 = vector.load %arg1[%c4, %c0_9, %c0_10] : memref<5x8x128xf32, #tpu.memory_space<vmem>>, vector<1x8x128xf32>
    %13 = vector.shape_cast %12 : vector<1x8x128xf32> to vector<8x128xf32>
    %c0_11 = arith.constant 0 : index
    %c0_12 = arith.constant 0 : index
    %c0_13 = arith.constant 0 : index
    %14 = vector.load %arg2[%c0_11, %c0_12, %c0_13] : memref<5x8x128xf32, #tpu.memory_space<vmem>>, vector<1x8x128xf32>
    %15 = vector.shape_cast %14 : vector<1x8x128xf32> to vector<8x128xf32>
    %c1_14 = arith.constant 1 : index
    %c0_15 = arith.constant 0 : index
    %c0_16 = arith.constant 0 : index
    %16 = vector.load %arg2[%c1_14, %c0_15, %c0_16] : memref<5x8x128xf32, #tpu.memory_space<vmem>>, vector<1x8x128xf32>
    %17 = vector.shape_cast %16 : vector<1x8x128xf32> to vector<8x128xf32>
    %c2_17 = arith.constant 2 : index
    %c0_18 = arith.constant 0 : index
    %c0_19 = arith.constant 0 : index
    %18 = vector.load %arg2[%c2_17, %c0_18, %c0_19] : memref<5x8x128xf32, #tpu.memory_space<vmem>>, vector<1x8x128xf32>
    %19 = vector.shape_cast %18 : vector<1x8x128xf32> to vector<8x128xf32>
    %cst_20 = arith.constant 1.000000e-07 : f32
    %20 = vector.broadcast %cst_20 : f32 to vector<8x128xf32>
    %21 = arith.maximumf %19, %20 : vector<8x128xf32>
    %c3_21 = arith.constant 3 : index
    %c0_22 = arith.constant 0 : index
    %c0_23 = arith.constant 0 : index
    %22 = vector.load %arg2[%c3_21, %c0_22, %c0_23] : memref<5x8x128xf32, #tpu.memory_space<vmem>>, vector<1x8x128xf32>
    %23 = vector.shape_cast %22 : vector<1x8x128xf32> to vector<8x128xf32>
    %cst_24 = arith.constant 1.000000e-07 : f32
    %24 = vector.broadcast %cst_24 : f32 to vector<8x128xf32>
    %25 = arith.maximumf %23, %24 : vector<8x128xf32>
    %c4_25 = arith.constant 4 : index
    %c0_26 = arith.constant 0 : index
    %c0_27 = arith.constant 0 : index
    %26 = vector.load %arg2[%c4_25, %c0_26, %c0_27] : memref<5x8x128xf32, #tpu.memory_space<vmem>>, vector<1x8x128xf32>
    %27 = vector.shape_cast %26 : vector<1x8x128xf32> to vector<8x128xf32>
    %cst_28 = arith.constant 2.500000e-01 : f32
    %28 = vector.broadcast %cst_28 : f32 to vector<8x128xf32>
    %29 = arith.mulf %28, %7 : vector<8x128xf32>
    %30 = arith.mulf %29, %7 : vector<8x128xf32>
    %cst_29 = arith.constant 2.500000e-01 : f32
    %31 = vector.broadcast %cst_29 : f32 to vector<8x128xf32>
    %32 = arith.mulf %31, %11 : vector<8x128xf32>
    %33 = arith.mulf %32, %11 : vector<8x128xf32>
    %34 = arith.addf %30, %33 : vector<8x128xf32>
    %cst_30 = arith.constant 5.000000e-01 : f32
    %35 = vector.broadcast %cst_30 : f32 to vector<8x128xf32>
    %36 = arith.mulf %35, %34 : vector<8x128xf32>
    %37 = arith.subf %30, %33 : vector<8x128xf32>
    %cst_31 = arith.constant 5.000000e-01 : f32
    %38 = vector.broadcast %cst_31 : f32 to vector<8x128xf32>
    %39 = arith.mulf %38, %37 : vector<8x128xf32>
    %cst_32 = arith.constant 2.000000e+00 : f32
    %40 = vector.broadcast %cst_32 : f32 to vector<8x128xf32>
    %41 = arith.mulf %40, %13 : vector<8x128xf32>
    %42 = math.cos %41 : vector<8x128xf32>
    %cst_33 = arith.constant 2.000000e+00 : f32
    %43 = vector.broadcast %cst_33 : f32 to vector<8x128xf32>
    %44 = arith.mulf %43, %13 : vector<8x128xf32>
    %45 = math.sin %44 : vector<8x128xf32>
    %46 = arith.mulf %39, %42 : vector<8x128xf32>
    %47 = arith.addf %36, %46 : vector<8x128xf32>
    %48 = arith.mulf %39, %45 : vector<8x128xf32>
    %49 = arith.mulf %39, %42 : vector<8x128xf32>
    %50 = arith.subf %36, %49 : vector<8x128xf32>
    %51 = arith.mulf %30, %33 : vector<8x128xf32>
    %cst_34 = arith.constant 2.500000e-01 : f32
    %52 = vector.broadcast %cst_34 : f32 to vector<8x128xf32>
    %53 = arith.mulf %52, %21 : vector<8x128xf32>
    %54 = arith.mulf %53, %21 : vector<8x128xf32>
    %cst_35 = arith.constant 2.500000e-01 : f32
    %55 = vector.broadcast %cst_35 : f32 to vector<8x128xf32>
    %56 = arith.mulf %55, %25 : vector<8x128xf32>
    %57 = arith.mulf %56, %25 : vector<8x128xf32>
    %58 = arith.addf %54, %57 : vector<8x128xf32>
    %cst_36 = arith.constant 5.000000e-01 : f32
    %59 = vector.broadcast %cst_36 : f32 to vector<8x128xf32>
    %60 = arith.mulf %59, %58 : vector<8x128xf32>
    %61 = arith.subf %54, %57 : vector<8x128xf32>
    %cst_37 = arith.constant 5.000000e-01 : f32
    %62 = vector.broadcast %cst_37 : f32 to vector<8x128xf32>
    %63 = arith.mulf %62, %61 : vector<8x128xf32>
    %cst_38 = arith.constant 2.000000e+00 : f32
    %64 = vector.broadcast %cst_38 : f32 to vector<8x128xf32>
    %65 = arith.mulf %64, %27 : vector<8x128xf32>
    %66 = math.cos %65 : vector<8x128xf32>
    %cst_39 = arith.constant 2.000000e+00 : f32
    %67 = vector.broadcast %cst_39 : f32 to vector<8x128xf32>
    %68 = arith.mulf %67, %27 : vector<8x128xf32>
    %69 = math.sin %68 : vector<8x128xf32>
    %70 = arith.mulf %63, %66 : vector<8x128xf32>
    %71 = arith.addf %60, %70 : vector<8x128xf32>
    %72 = arith.mulf %63, %69 : vector<8x128xf32>
    %73 = arith.mulf %63, %66 : vector<8x128xf32>
    %74 = arith.subf %60, %73 : vector<8x128xf32>
    %75 = tpu.reciprocal %51 {approx = true} : vector<8x128xf32> -> vector<8x128xf32>
    %76 = arith.mulf %51, %75 : vector<8x128xf32>
    %cst_40 = arith.constant 2.000000e+00 : f32
    %77 = vector.broadcast %cst_40 : f32 to vector<8x128xf32>
    %78 = arith.subf %77, %76 : vector<8x128xf32>
    %79 = arith.mulf %75, %78 : vector<8x128xf32>
    %cst_41 = arith.constant 5.000000e-01 : f32
    %80 = vector.broadcast %cst_41 : f32 to vector<8x128xf32>
    %81 = arith.mulf %80, %79 : vector<8x128xf32>
    %82 = arith.mulf %50, %81 : vector<8x128xf32>
    %83 = arith.mulf %48, %81 : vector<8x128xf32>
    %cst_42 = arith.constant 0.000000e+00 : f32
    %84 = vector.broadcast %cst_42 : f32 to vector<8x128xf32>
    %85 = arith.subf %84, %83 : vector<8x128xf32>
    %86 = arith.mulf %47, %81 : vector<8x128xf32>
    %87 = arith.subf %1, %15 : vector<8x128xf32>
    %88 = arith.subf %3, %17 : vector<8x128xf32>
    %89 = arith.mulf %82, %87 : vector<8x128xf32>
    %90 = arith.mulf %89, %87 : vector<8x128xf32>
    %91 = arith.mulf %85, %87 : vector<8x128xf32>
    %92 = arith.mulf %91, %88 : vector<8x128xf32>
    %cst_43 = arith.constant 2.000000e+00 : f32
    %93 = vector.broadcast %cst_43 : f32 to vector<8x128xf32>
    %94 = arith.mulf %93, %92 : vector<8x128xf32>
    %95 = arith.addf %90, %94 : vector<8x128xf32>
    %96 = arith.mulf %86, %88 : vector<8x128xf32>
    %97 = arith.mulf %96, %88 : vector<8x128xf32>
    %98 = arith.addf %95, %97 : vector<8x128xf32>
    %99 = arith.mulf %82, %71 : vector<8x128xf32>
    %100 = arith.mulf %85, %72 : vector<8x128xf32>
    %cst_44 = arith.constant 2.000000e+00 : f32
    %101 = vector.broadcast %cst_44 : f32 to vector<8x128xf32>
    %102 = arith.mulf %101, %100 : vector<8x128xf32>
    %103 = arith.addf %99, %102 : vector<8x128xf32>
    %104 = arith.mulf %86, %74 : vector<8x128xf32>
    %105 = arith.addf %103, %104 : vector<8x128xf32>
    %106 = arith.mulf %7, %11 : vector<8x128xf32>
    %107 = math.log %106 : vector<8x128xf32>
    %108 = arith.mulf %21, %25 : vector<8x128xf32>
    %109 = math.log %108 : vector<8x128xf32>
    %110 = arith.subf %107, %109 : vector<8x128xf32>
    %111 = arith.addf %105, %110 : vector<8x128xf32>
    %cst_45 = arith.constant 1.000000e+00 : f32
    %112 = vector.broadcast %cst_45 : f32 to vector<8x128xf32>
    %113 = arith.subf %111, %112 : vector<8x128xf32>
    %114 = arith.addf %98, %113 : vector<8x128xf32>
    %cst_46 = arith.constant 0.000000e+00 : f32
    %115 = vector.broadcast %cst_46 : f32 to vector<8x128xf32>
    %116 = arith.maximumf %114, %115 : vector<8x128xf32>
    %117 = math.sqrt %116 : vector<8x128xf32>
    %118 = math.log1p %117 : vector<8x128xf32>
    %cst_47 = arith.constant 1.000000e+00 : f32
    %119 = vector.broadcast %cst_47 : f32 to vector<8x128xf32>
    %120 = arith.addf %119, %118 : vector<8x128xf32>
    %121 = tpu.reciprocal %120 {approx = true} : vector<8x128xf32> -> vector<8x128xf32>
    %122 = arith.mulf %120, %121 : vector<8x128xf32>
    %cst_48 = arith.constant 2.000000e+00 : f32
    %123 = vector.broadcast %cst_48 : f32 to vector<8x128xf32>
    %124 = arith.subf %123, %122 : vector<8x128xf32>
    %125 = arith.mulf %121, %124 : vector<8x128xf32>
    %cst_49 = arith.constant 1.000000e+00 : f32
    %126 = vector.broadcast %cst_49 : f32 to vector<8x128xf32>
    %127 = arith.subf %126, %125 : vector<8x128xf32>
    %c0_50 = arith.constant 0 : index
    %c0_51 = arith.constant 0 : index
    %128 = vector.load %arg3[%c0_50, %c0_51] : memref<8x128xf32, #tpu.memory_space<vmem>>, vector<8x128xf32>
    tpu.vector_store %arg3[%c0_50, %c0_51], %127 {strides = array<i32>} : memref<8x128xf32, #tpu.memory_space<vmem>>, vector<8x128xf32>,
    return
  }
  func.func @transform_0(%arg0: i32) -> (i32, i32, i32) {
    %c0_i32 = arith.constant 0 : i32
    %c0_i32_0 = arith.constant 0 : i32
    %c0_i32_1 = arith.constant 0 : i32
    return %c0_i32, %arg0, %c0_i32_0 : i32, i32, i32
  }
  func.func @transform_1(%arg0: i32) -> (i32, i32, i32) {
    %c0_i32 = arith.constant 0 : i32
    %c0_i32_0 = arith.constant 0 : i32
    %c0_i32_1 = arith.constant 0 : i32
    return %c0_i32, %arg0, %c0_i32_0 : i32, i32, i32
  }
  func.func @transform_2(%arg0: i32) -> (i32, i32) {
    %c0_i32 = arith.constant 0 : i32
    %c0_i32_0 = arith.constant 0 : i32
    return %arg0, %c0_i32 : i32, i32
  }
}

</mosaic_0001>

<llo_original>
// kernel: tpu_custom_call.1
$region0: #{tpu_custom_call.1}
  #allocation0 [shape = 'u32[]', space=smem, size = 0x4, offset = 0x4, fixed_abs, tag = 'smem constant byte address 0x4 - core index']
  #allocation1 [shape = 'u32[144,128]{1,0:T(1,128)}', space=vmem, size = 0x12000, scoped, tag = 'internal scratch']
  %s0 = inlined_call_operand.hbm [shape: f32[5,8,128], index: 0, kind: input, shape index: {}]
  %s1 = inlined_call_operand.hbm [shape: f32[5,8,128], index: 1, kind: input, shape index: {}]
  %s2 = inlined_call_operand.hbm [shape: f32[8,128], index: 2, kind: output, shape index: {}]
  %s3 = sld [smem:[#allocation0]]
  $region26: #{tpu_custom_call.1} parent=0
    _
  %s5 = ssub.s32 1, %s3
  %s6 = scalar_select 0, %s5, %s3
  $region1: #{tpu_custom_call.1} parent=0
    #allocation2 [shape = 'u8[20480]{0}', space=vmem, size = 0x5000, scoped, tag = 'input window, operand 0, single buffered']
    #allocation3 [shape = 's32[1]{0}', space=sflag, size = 0x4, scoped, tag = 'scoped memory for tpu_custom_call.1']
    #allocation4 [shape = 's32[1]{0}', space=sflag, size = 0x4, scoped, tag = 'scoped memory for tpu_custom_call.1']
    #allocation5 [shape = 'u8[20480]{0}', space=vmem, size = 0x5000, scoped, tag = 'input window, operand 1, single buffered']
    #allocation6 [shape = 's32[1]{0}', space=sflag, size = 0x4, scoped, tag = 'scoped memory for tpu_custom_call.1']
    #allocation7 [shape = 'u8[4096]{0}', space=vmem, size = 0x1000, scoped, tag = 'output window, operand 0, single buffered']
    %7 = vsyncpa [#allocation3], 0
    %8 = vsyncpa [#allocation6], 0
    %9 = vsyncpa [#allocation4], 0
    // Predicated region
    $region2: #{tpu_custom_call.1} parent=1 // pred_check
      _
    $region3: #{tpu_custom_call.1} parent=1 // pred_check_branch
      %11 = sbr.rel (0) target = $region5
    $region4: #{tpu_custom_call.1} parent=1 // pred_region
      %s13 = ssub.s32 640, 640
      %14 = vsyncadd [#allocation3], %s13
      %s15 = sshll.u32 [#allocation2], 4
      %s16 = int_to_ptr.vmem [resolvable:$true] %s15
      %21 = dma.hbm_to_vmem [thread:$0]  %s0, 640, %s16, [#allocation3], 128, 128, 8
    $region5: #{tpu_custom_call.1} parent=1 // pred_fallthru
      _
    // Predicated region
    $region6: #{tpu_custom_call.1} parent=1 // pred_check
      _
    $region7: #{tpu_custom_call.1} parent=1 // pred_check_branch
      %23 = sbr.rel (0) target = $region9
    $region8: #{tpu_custom_call.1} parent=1 // pred_region
      %s25 = ssub.s32 640, 640
      %26 = vsyncadd [#allocation6], %s25
      %s27 = sshll.u32 [#allocation5], 4
      %s28 = int_to_ptr.vmem [resolvable:$true] %s27
      %33 = dma.hbm_to_vmem [thread:$0]  %s1, 640, %s28, [#allocation6], 128, 128, 8
    $region9: #{tpu_custom_call.1} parent=1 // pred_fallthru
      _
    // Predicated region
    $region10: #{tpu_custom_call.1} parent=1 // pred_check
      _
    $region11: #{tpu_custom_call.1} parent=1 // pred_check_branch
      %35 = sbr.rel (0) target = $region13
    $region12: #{tpu_custom_call.1} parent=1 // pred_region
      %36 = dma.done [#allocation3], 640
    $region13: #{tpu_custom_call.1} parent=1 // pred_fallthru
      _
    // Predicated region
    $region14: #{tpu_custom_call.1} parent=1 // pred_check
      _
    $region15: #{tpu_custom_call.1} parent=1 // pred_check_branch
      %38 = sbr.rel (0) target = $region17
    $region16: #{tpu_custom_call.1} parent=1 // pred_region
      %39 = dma.done [#allocation6], 640
    $region17: #{tpu_custom_call.1} parent=1 // pred_fallthru
      _
    %v40 = vld [vmem:[#allocation2] sm:$0xff]
    %s41 = scalar_lea.vmem [#allocation2], 8
    %v42 = vld [vmem:[%s41] sm:$0xff]
    %s43 = scalar_lea.vmem [#allocation2], 16
    %v44 = vld [vmem:[%s43] sm:$0xff]
    %v45 = vmax.f32 %v44, 1e-07
    %s46 = scalar_lea.vmem [#allocation2], 24
    %v47 = vld [vmem:[%s46] sm:$0xff]
    %v48 = vmax.f32 %v47, 1e-07
    %s49 = scalar_lea.vmem [#allocation2], 32
    %v50 = vld [vmem:[%s49] sm:$0xff]
    %v51 = vld [vmem:[#allocation5] sm:$0xff]
    %s52 = scalar_lea.vmem [#allocation5], 8
    %v53 = vld [vmem:[%s52] sm:$0xff]
    %s54 = scalar_lea.vmem [#allocation5], 16
    %v55 = vld [vmem:[%s54] sm:$0xff]
    %v56 = vmax.f32 %v55, 1e-07
    %s57 = scalar_lea.vmem [#allocation5], 24
    %v58 = vld [vmem:[%s57] sm:$0xff]
    %v59 = vmax.f32 %v58, 1e-07
    %s60 = scalar_lea.vmem [#allocation5], 32
    %v61 = vld [vmem:[%s60] sm:$0xff]
    %v62 = vmul.f32 %v45, 0.25
    %v63 = vmul.f32 %v62, %v45
    %v64 = vmul.f32 %v48, 0.25
    %v65 = vmul.f32 %v64, %v48
    %v66 = vadd.f32 %v63, %v65
    %v67 = vmul.f32 %v66, 0.5
    %v68 = vsub.f32 %v63, %v65
    %v69 = vmul.f32 %v68, 0.5
    %v70 = vmul.f32 %v50, 2.0
    %v71 = vand.u32 2147483647, %v70
    %vm72 = vcmp.le.f32.partialorder %v71, 0.7853982
    %vm73 = vcmp.lt.s32.totalorder %v70, 0
    %v74 = vand.u32 %v70, 2139095040
    %v75 = vshrl.u32 %v74, 23
    %v76 = vsub.s32 %v75, 127
    %v77 = vand.u32 2147483647, %v70
    %v78 = vand.u32 %v77, 8388607
    %v79 = vor.u32 %v78, 8388608
    %v80 = vsub.s32 0, %v79
    %v81 = vadd.s32 %v76, 1
    %vm82 = vcmp.gt.s32.totalorder %v81, 0
    %v83 = vsel %vm82, %v81, 0
    %v84 = vshrl.u32 %v83, 5
    %v85 = vand.u32 %v83, 31
    %v86 = vsub.s32 32, %v85
    %v87 = vshrl.u32 683565275, %v86
    %v88 = vshll.u32 683565275, %v85
    %v89 = vshrl.u32 2475754826, %v86
    %v90 = vor.u32 %v88, %v89
    %v91 = vshll.u32 2475754826, %v85
    %v92 = vshrl.u32 2131351028, %v86
    %v93 = vor.u32 %v91, %v92
    %v94 = vshll.u32 2131351028, %v85
    %v95 = vshrl.u32 2102212464, %v86
    %v96 = vor.u32 %v94, %v95
    %v97 = vshll.u32 2102212464, %v85
    %v98 = vshrl.u32 920167782, %v86
    %v99 = vor.u32 %v97, %v98
    %v100 = vshll.u32 920167782, %v85
    %v101 = vshrl.u32 1326507024, %v86
    %v102 = vor.u32 %v100, %v101
    %vm103 = vcmp.lt.s32.totalorder %v84, 1
    %vm104 = vcmp.lt.s32.totalorder %v84, 2
    %vm105 = vcmp.lt.s32.totalorder %v84, 3
    %vm106 = vcmp.lt.s32.totalorder %v84, 4
    %v107 = vsel %vm103, %v87, %v90
    %v108 = vsel %vm106, %v96, 2102212464
    %v109 = vsel %vm105, %v93, %v108
    %v110 = vsel %vm104, %v107, %v109
    %v111 = vsel %vm103, %v90, %v93
    %v112 = vsel %vm106, %v99, 920167782
    %v113 = vsel %vm105, %v96, %v112
    %v114 = vsel %vm104, %v111, %v113
    %v115 = vsel %vm103, %v93, %v96
    %v116 = vsel %vm106, %v102, 1326507024
    %v117 = vsel %vm105, %v99, %v116
    %v118 = vsel %vm104, %v115, %v117
    %v119 = vshll.u32 %v79, 8
    %v120 = vmul.u32.u64.compose %v119, %v118
    %v121 = vextract.low.u32 %v120
    %v122 = vextract.high.u32 %v120
    %v123 = vmul.u32.u64.compose %v119, %v114
    %v124 = vextract.low.u32 %v123
    %v125 = vextract.high.u32 %v123
    %v126 = vmul.u32 %v119, %v110
    %v127 = vadd.s32 %v122, %v124
    %vm128 = vc.u32 %v122, %v124
    %v129 = vadd.s32 %v125, 1
    %v130 = vsel %vm128, %v129, %v125
    %v131 = vadd.s32 %v126, %v130
    %v132 = vadd.s32 %v131, 536870912
    %v133 = vshrl.u32 %v132, 30
    %v134 = vshll.u32 %v133, 30
    %v135 = vsub.s32 %v131, %v134
    %vm136 = vcmp.lt.s32.totalorder %v135, 0
    %v137 = vsub.s32 0, %v135
    %v138 = vsel %vm136, %v137, %v135
    %v139 = vclz %v138
    %v140 = vsub.s32 %v139, 2
    %vm141 = vcmp.gt.s32.totalorder 0, %v140
    %v142 = vsel %vm141, 0, %v140
    %v143 = vsub.s32 32, %v142
    %v144 = vshll.u32 %v135, %v142
    %v145 = vshrl.u32 %v127, %v143
    %v146 = vor.u32 %v144, %v145
    %v147 = vsub.s32 4294967266, %v142
    %v148 = vadd.s32 %v147, 127
    %v149 = vshll.u32 %v148, 23
    %v150 = vor.u32 4788187, %v149
    %v151 = vand.u32 2147483647, %v150
    %v153 = vcvt.s32.f32 %v146
    %v154 = vmul.f32 %v153, %v151
    %v155 = vxor.u32 %v154, 2147483648
    %v156 = vsel %vm73, %v155, %v154
    %v157 = vsub.s32 4, %v133
    %v158 = vsel %vm73, %v157, %v133
    %v159 = vsel %vm72, %v70, %v156
    %v160 = vsel %vm72, 0, %v158
    %v161 = vcosq.f32.pop %v159
    %v162 = vsinq.f32.pop %v159
    %vm163 = vweird.f32 %v70
    %v164 = vand.u32 %v160, 3
    %vm165 = vcmp.lt.s32.totalorder %v164, 2
    %vm166 = vcmp.eq.s32.totalorder %v164, 0
    %v167 = vxor.u32 %v162, 2147483648
    %v168 = vsel %vm166, %v161, %v167
    %vm169 = vcmp.eq.s32.totalorder %v164, 2
    %v170 = vxor.u32 %v161, 2147483648
    %v171 = vsel %vm169, %v170, %v162
    %v172 = vsel %vm165, %v168, %v171
    %v173 = vsel %vm163, nan, %v172
    %v174 = vand.u32 2147483647, %v70
    %vm175 = vcmp.le.f32.partialorder %v174, 0.7853982
    %vm176 = vcmp.lt.s32.totalorder %v70, 0
    %v177 = vand.u32 %v70, 2139095040
    %v178 = vshrl.u32 %v177, 23
    %v179 = vsub.s32 %v178, 127
    %v180 = vand.u32 2147483647, %v70
    %v181 = vand.u32 %v180, 8388607
    %v182 = vor.u32 %v181, 8388608
    %v183 = vsub.s32 0, %v182
    %v184 = vadd.s32 %v179, 1
    %vm185 = vcmp.gt.s32.totalorder %v184, 0
    %v186 = vsel %vm185, %v184, 0
    %v187 = vshrl.u32 %v186, 5
    %v188 = vand.u32 %v186, 31
    %v189 = vsub.s32 32, %v188
    %v190 = vshrl.u32 683565275, %v189
    %v191 = vshll.u32 683565275, %v188
    %v192 = vshrl.u32 2475754826, %v189
    %v193 = vor.u32 %v191, %v192
    %v194 = vshll.u32 2475754826, %v188
    %v195 = vshrl.u32 2131351028, %v189
    %v196 = vor.u32 %v194, %v195
    %v197 = vshll.u32 2131351028, %v188
    %v198 = vshrl.u32 2102212464, %v189
    %v199 = vor.u32 %v197, %v198
    %v200 = vshll.u32 2102212464, %v188
    %v201 = vshrl.u32 920167782, %v189
    %v202 = vor.u32 %v200, %v201
    %v203 = vshll.u32 920167782, %v188
    %v204 = vshrl.u32 1326507024, %v189
    %v205 = vor.u32 %v203, %v204
    %vm206 = vcmp.lt.s32.totalorder %v187, 1
    %vm207 = vcmp.lt.s32.totalorder %v187, 2
    %vm208 = vcmp.lt.s32.totalorder %v187, 3
    %vm209 = vcmp.lt.s32.totalorder %v187, 4
    %v210 = vsel %vm206, %v190, %v193
    %v211 = vsel %vm209, %v199, 2102212464
    %v212 = vsel %vm208, %v196, %v211
    %v213 = vsel %vm207, %v210, %v212
    %v214 = vsel %vm206, %v193, %v196
    %v215 = vsel %vm209, %v202, 920167782
    %v216 = vsel %vm208, %v199, %v215
    %v217 = vsel %vm207, %v214, %v216
    %v218 = vsel %vm206, %v196, %v199
    %v219 = vsel %vm209, %v205, 1326507024
    %v220 = vsel %vm208, %v202, %v219
    %v221 = vsel %vm207, %v218, %v220
    %v222 = vshll.u32 %v182, 8
    %v223 = vmul.u32.u64.compose %v222, %v221
    %v224 = vextract.low.u32 %v223
    %v225 = vextract.high.u32 %v223
    %v226 = vmul.u32.u64.compose %v222, %v217
    %v227 = vextract.low.u32 %v226
    %v228 = vextract.high.u32 %v226
    %v229 = vmul.u32 %v222, %v213
    %v230 = vadd.s32 %v225, %v227
    %vm231 = vc.u32 %v225, %v227
    %v232 = vadd.s32 %v228, 1
    %v233 = vsel %vm231, %v232, %v228
    %v234 = vadd.s32 %v229, %v233
    %v235 = vadd.s32 %v234, 536870912
    %v236 = vshrl.u32 %v235, 30
    %v237 = vshll.u32 %v236, 30
    %v238 = vsub.s32 %v234, %v237
    %vm239 = vcmp.lt.s32.totalorder %v238, 0
    %v240 = vsub.s32 0, %v238
    %v241 = vsel %vm239, %v240, %v238
    %v242 = vclz %v241
    %v243 = vsub.s32 %v242, 2
    %vm244 = vcmp.gt.s32.totalorder 0, %v243
    %v245 = vsel %vm244, 0, %v243
    %v246 = vsub.s32 32, %v245
    %v247 = vshll.u32 %v238, %v245
    %v248 = vshrl.u32 %v230, %v246
    %v249 = vor.u32 %v247, %v248
    %v250 = vsub.s32 4294967266, %v245
    %v251 = vadd.s32 %v250, 127
    %v252 = vshll.u32 %v251, 23
    %v253 = vor.u32 4788187, %v252
    %v254 = vand.u32 2147483647, %v253
    %v256 = vcvt.s32.f32 %v249
    %v257 = vmul.f32 %v256, %v254
    %v258 = vxor.u32 %v257, 2147483648
    %v259 = vsel %vm176, %v258, %v257
    %v260 = vsub.s32 4, %v236
    %v261 = vsel %vm176, %v260, %v236
    %v262 = vsel %vm175, %v70, %v259
    %v263 = vsel %vm175, 0, %v261
    %v264 = vcosq.f32.pop %v262
    %v265 = vsinq.f32.pop %v262
    %vm266 = vweird.f32 %v70
    %v267 = vadd.s32 %v263, 3
    %v268 = vand.u32 %v267, 3
    %vm269 = vcmp.lt.s32.totalorder %v268, 2
    %vm270 = vcmp.eq.s32.totalorder %v268, 0
    %v271 = vxor.u32 %v265, 2147483648
    %v272 = vsel %vm270, %v264, %v271
    %vm273 = vcmp.eq.s32.totalorder %v268, 2
    %v274 = vxor.u32 %v264, 2147483648
    %v275 = vsel %vm273, %v274, %v265
    %v276 = vsel %vm269, %v272, %v275
    %v277 = vsel %vm266, nan, %v276
    %v278 = vmul.f32 %v69, %v173
    %v279 = vadd.f32 %v67, %v278
    %v280 = vmul.f32 %v69, %v277
    %v281 = vsub.f32 %v67, %v278
    %v282 = vmul.f32 %v63, %v65
    %v283 = vmul.f32 %v56, 0.25
    %v284 = vmul.f32 %v283, %v56
    %v285 = vmul.f32 %v59, 0.25
    %v286 = vmul.f32 %v285, %v59
    %v287 = vadd.f32 %v284, %v286
    %v288 = vmul.f32 %v287, 0.5
    %v289 = vsub.f32 %v284, %v286
    %v290 = vmul.f32 %v289, 0.5
    %v291 = vmul.f32 %v61, 2.0
    %v292 = vand.u32 2147483647, %v291
    %vm293 = vcmp.le.f32.partialorder %v292, 0.7853982
    %vm294 = vcmp.lt.s32.totalorder %v291, 0
    %v295 = vand.u32 %v291, 2139095040
    %v296 = vshrl.u32 %v295, 23
    %v297 = vsub.s32 %v296, 127
    %v298 = vand.u32 2147483647, %v291
    %v299 = vand.u32 %v298, 8388607
    %v300 = vor.u32 %v299, 8388608
    %v301 = vsub.s32 0, %v300
    %v302 = vadd.s32 %v297, 1
    %vm303 = vcmp.gt.s32.totalorder %v302, 0
    %v304 = vsel %vm303, %v302, 0
    %v305 = vshrl.u32 %v304, 5
    %v306 = vand.u32 %v304, 31
    %v307 = vsub.s32 32, %v306
    %v308 = vshrl.u32 683565275, %v307
    %v309 = vshll.u32 683565275, %v306
    %v310 = vshrl.u32 2475754826, %v307
    %v311 = vor.u32 %v309, %v310
    %v312 = vshll.u32 2475754826, %v306
    %v313 = vshrl.u32 2131351028, %v307
    %v314 = vor.u32 %v312, %v313
    %v315 = vshll.u32 2131351028, %v306
    %v316 = vshrl.u32 2102212464, %v307
    %v317 = vor.u32 %v315, %v316
    %v318 = vshll.u32 2102212464, %v306
    %v319 = vshrl.u32 920167782, %v307
    %v320 = vor.u32 %v318, %v319
    %v321 = vshll.u32 920167782, %v306
    %v322 = vshrl.u32 1326507024, %v307
    %v323 = vor.u32 %v321, %v322
    %vm324 = vcmp.lt.s32.totalorder %v305, 1
    %vm325 = vcmp.lt.s32.totalorder %v305, 2
    %vm326 = vcmp.lt.s32.totalorder %v305, 3
    %vm327 = vcmp.lt.s32.totalorder %v305, 4
    %v328 = vsel %vm324, %v308, %v311
    %v329 = vsel %vm327, %v317, 2102212464
    %v330 = vsel %vm326, %v314, %v329
    %v331 = vsel %vm325, %v328, %v330
    %v332 = vsel %vm324, %v311, %v314
    %v333 = vsel %vm327, %v320, 920167782
    %v334 = vsel %vm326, %v317, %v333
    %v335 = vsel %vm325, %v332, %v334
    %v336 = vsel %vm324, %v314, %v317
    %v337 = vsel %vm327, %v323, 1326507024
    %v338 = vsel %vm326, %v320, %v337
    %v339 = vsel %vm325, %v336, %v338
    %v340 = vshll.u32 %v300, 8
    %v341 = vmul.u32.u64.compose %v340, %v339
    %v342 = vextract.low.u32 %v341
    %v343 = vextract.high.u32 %v341
    %v344 = vmul.u32.u64.compose %v340, %v335
    %v345 = vextract.low.u32 %v344
    %v346 = vextract.high.u32 %v344
    %v347 = vmul.u32 %v340, %v331
    %v348 = vadd.s32 %v343, %v345
    %vm349 = vc.u32 %v343, %v345
    %v350 = vadd.s32 %v346, 1
    %v351 = vsel %vm349, %v350, %v346
    %v352 = vadd.s32 %v347, %v351
    %v353 = vadd.s32 %v352, 536870912
    %v354 = vshrl.u32 %v353, 30
    %v355 = vshll.u32 %v354, 30
    %v356 = vsub.s32 %v352, %v355
    %vm357 = vcmp.lt.s32.totalorder %v356, 0
    %v358 = vsub.s32 0, %v356
    %v359 = vsel %vm357, %v358, %v356
    %v360 = vclz %v359
    %v361 = vsub.s32 %v360, 2
    %vm362 = vcmp.gt.s32.totalorder 0, %v361
    %v363 = vsel %vm362, 0, %v361
    %v364 = vsub.s32 32, %v363
    %v365 = vshll.u32 %v356, %v363
    %v366 = vshrl.u32 %v348, %v364
    %v367 = vor.u32 %v365, %v366
    %v368 = vsub.s32 4294967266, %v363
    %v369 = vadd.s32 %v368, 127
    %v370 = vshll.u32 %v369, 23
    %v371 = vor.u32 4788187, %v370
    %v372 = vand.u32 2147483647, %v371
    %v374 = vcvt.s32.f32 %v367
    %v375 = vmul.f32 %v374, %v372
    %v376 = vxor.u32 %v375, 2147483648
    %v377 = vsel %vm294, %v376, %v375
    %v378 = vsub.s32 4, %v354
    %v379 = vsel %vm294, %v378, %v354
    %v380 = vsel %vm293, %v291, %v377
    %v381 = vsel %vm293, 0, %v379
    %v382 = vcosq.f32.pop %v380
    %v383 = vsinq.f32.pop %v380
    %vm384 = vweird.f32 %v291
    %v385 = vand.u32 %v381, 3
    %vm386 = vcmp.lt.s32.totalorder %v385, 2
    %vm387 = vcmp.eq.s32.totalorder %v385, 0
    %v388 = vxor.u32 %v383, 2147483648
    %v389 = vsel %vm387, %v382, %v388
    %vm390 = vcmp.eq.s32.totalorder %v385, 2
    %v391 = vxor.u32 %v382, 2147483648
    %v392 = vsel %vm390, %v391, %v383
    %v393 = vsel %vm386, %v389, %v392
    %v394 = vsel %vm384, nan, %v393
    %v395 = vand.u32 2147483647, %v291
    %vm396 = vcmp.le.f32.partialorder %v395, 0.7853982
    %vm397 = vcmp.lt.s32.totalorder %v291, 0
    %v398 = vand.u32 %v291, 2139095040
    %v399 = vshrl.u32 %v398, 23
    %v400 = vsub.s32 %v399, 127
    %v401 = vand.u32 2147483647, %v291
    %v402 = vand.u32 %v401, 8388607
    %v403 = vor.u32 %v402, 8388608
    %v404 = vsub.s32 0, %v403
    %v405 = vadd.s32 %v400, 1
    %vm406 = vcmp.gt.s32.totalorder %v405, 0
    %v407 = vsel %vm406, %v405, 0
    %v408 = vshrl.u32 %v407, 5
    %v409 = vand.u32 %v407, 31
    %v410 = vsub.s32 32, %v409
    %v411 = vshrl.u32 683565275, %v410
    %v412 = vshll.u32 683565275, %v409
    %v413 = vshrl.u32 2475754826, %v410
    %v414 = vor.u32 %v412, %v413
    %v415 = vshll.u32 2475754826, %v409
    %v416 = vshrl.u32 2131351028, %v410
    %v417 = vor.u32 %v415, %v416
    %v418 = vshll.u32 2131351028, %v409
    %v419 = vshrl.u32 2102212464, %v410
    %v420 = vor.u32 %v418, %v419
    %v421 = vshll.u32 2102212464, %v409
    %v422 = vshrl.u32 920167782, %v410
    %v423 = vor.u32 %v421, %v422
    %v424 = vshll.u32 920167782, %v409
    %v425 = vshrl.u32 1326507024, %v410
    %v426 = vor.u32 %v424, %v425
    %vm427 = vcmp.lt.s32.totalorder %v408, 1
    %vm428 = vcmp.lt.s32.totalorder %v408, 2
    %vm429 = vcmp.lt.s32.totalorder %v408, 3
    %vm430 = vcmp.lt.s32.totalorder %v408, 4
    %v431 = vsel %vm427, %v411, %v414
    %v432 = vsel %vm430, %v420, 2102212464
    %v433 = vsel %vm429, %v417, %v432
    %v434 = vsel %vm428, %v431, %v433
    %v435 = vsel %vm427, %v414, %v417
    %v436 = vsel %vm430, %v423, 920167782
    %v437 = vsel %vm429, %v420, %v436
    %v438 = vsel %vm428, %v435, %v437
    %v439 = vsel %vm427, %v417, %v420
    %v440 = vsel %vm430, %v426, 1326507024
    %v441 = vsel %vm429, %v423, %v440
    %v442 = vsel %vm428, %v439, %v441
    %v443 = vshll.u32 %v403, 8
    %v444 = vmul.u32.u64.compose %v443, %v442
    %v445 = vextract.low.u32 %v444
    %v446 = vextract.high.u32 %v444
    %v447 = vmul.u32.u64.compose %v443, %v438
    %v448 = vextract.low.u32 %v447
    %v449 = vextract.high.u32 %v447
    %v450 = vmul.u32 %v443, %v434
    %v451 = vadd.s32 %v446, %v448
    %vm452 = vc.u32 %v446, %v448
    %v453 = vadd.s32 %v449, 1
    %v454 = vsel %vm452, %v453, %v449
    %v455 = vadd.s32 %v450, %v454
    %v456 = vadd.s32 %v455, 536870912
    %v457 = vshrl.u32 %v456, 30
    %v458 = vshll.u32 %v457, 30
    %v459 = vsub.s32 %v455, %v458
    %vm460 = vcmp.lt.s32.totalorder %v459, 0
    %v461 = vsub.s32 0, %v459
    %v462 = vsel %vm460, %v461, %v459
    %v463 = vclz %v462
    %v464 = vsub.s32 %v463, 2
    %vm465 = vcmp.gt.s32.totalorder 0, %v464
    %v466 = vsel %vm465, 0, %v464
    %v467 = vsub.s32 32, %v466
    %v468 = vshll.u32 %v459, %v466
    %v469 = vshrl.u32 %v451, %v467
    %v470 = vor.u32 %v468, %v469
    %v471 = vsub.s32 4294967266, %v466
    %v472 = vadd.s32 %v471, 127
    %v473 = vshll.u32 %v472, 23
    %v474 = vor.u32 4788187, %v473
    %v475 = vand.u32 2147483647, %v474
    %v477 = vcvt.s32.f32 %v470
    %v478 = vmul.f32 %v477, %v475
    %v479 = vxor.u32 %v478, 2147483648
    %v480 = vsel %vm397, %v479, %v478
    %v481 = vsub.s32 4, %v457
    %v482 = vsel %vm397, %v481, %v457
    %v483 = vsel %vm396, %v291, %v480
    %v484 = vsel %vm396, 0, %v482
    %v485 = vcosq.f32.pop %v483
    %v486 = vsinq.f32.pop %v483
    %vm487 = vweird.f32 %v291
    %v488 = vadd.s32 %v484, 3
    %v489 = vand.u32 %v488, 3
    %vm490 = vcmp.lt.s32.totalorder %v489, 2
    %vm491 = vcmp.eq.s32.totalorder %v489, 0
    %v492 = vxor.u32 %v486, 2147483648
    %v493 = vsel %vm491, %v485, %v492
    %vm494 = vcmp.eq.s32.totalorder %v489, 2
    %v495 = vxor.u32 %v485, 2147483648
    %v496 = vsel %vm494, %v495, %v486
    %v497 = vsel %vm490, %v493, %v496
    %v498 = vsel %vm487, nan, %v497
    %v499 = vmul.f32 %v290, %v394
    %v500 = vadd.f32 %v288, %v499
    %v501 = vmul.f32 %v290, %v498
    %v502 = vsub.f32 %v288, %v499
    %v503 = vrcp.pop %v282
    %v504 = vmul.f32 %v282, %v503
    %v505 = vsub.f32 2.0, %v504
    %v506 = vmul.f32 %v503, %v505
    %v507 = vmul.f32 %v506, 0.5
    %v508 = vmul.f32 %v281, %v507
    %v509 = vmul.f32 %v280, %v507
    %v510 = vsub.f32 0.0, %v509
    %v511 = vmul.f32 %v279, %v507
    %v512 = vsub.f32 %v40, %v51
    %v513 = vsub.f32 %v42, %v53
    %v514 = vmul.f32 %v508, %v512
    %v515 = vmul.f32 %v514, %v512
    %v516 = vmul.f32 %v510, %v512
    %v517 = vmul.f32 %v516, %v513
    %v518 = vmul.f32 %v517, 2.0
    %v519 = vadd.f32 %v515, %v518
    %v520 = vmul.f32 %v511, %v513
    %v521 = vmul.f32 %v520, %v513
    %v522 = vadd.f32 %v519, %v521
    %v523 = vmul.f32 %v508, %v500
    %v524 = vmul.f32 %v510, %v501
    %v525 = vmul.f32 %v524, 2.0
    %v526 = vadd.f32 %v523, %v525
    %v527 = vmul.f32 %v511, %v502
    %v528 = vadd.f32 %v526, %v527
    %v529 = vmul.f32 %v45, %v48
    %v530 = vlog2.pop %v529
    %v531 = vmul.f32 %v530, 0.6931472
    %v532 = vmul.f32 %v56, %v59
    %v533 = vlog2.pop %v532
    %v534 = vmul.f32 %v533, 0.6931472
    %v535 = vsub.f32 %v531, %v534
    %v536 = vadd.f32 %v528, %v535
    %v537 = vsub.f32 %v536, 1.0
    %v538 = vadd.f32 %v522, %v537
    %v539 = vmax.f32 %v538, 0.0
    %v540 = vrsqrt.pop %v539
    %v541 = vmul.f32 %v539, %v540
    %vm542 = vcmp.eq.f32.partialorder %v539, inf
    %v543 = vsel %vm542, %v539, %v541
    %vm544 = vcmp.eq.f32.partialorder %v539, 0.0
    %v545 = vand.u32 %v539, 2147483648
    %v546 = vsel %vm544, %v545, %v543
    %v547 = vadd.f32 %v546, 1.0
    %v548 = vlog2.pop %v547
    %v549 = vmul.f32 %v548, 0.6931472
    %v550 = vmul.f32 -0.5, %v546
    %v551 = vadd.f32 %v550, 1.0
    %v552 = vmul.f32 %v551, %v546
    %v553 = vand.u32 2147483647, %v546
    %vm554 = vcmp.lt.f32.partialorder %v553, 0.0004427343
    %v555 = vsel %vm554, %v552, %v549
    %v556 = vadd.f32 %v555, 1.0
    %v557 = vrcp.pop %v556
    %v558 = vmul.f32 %v556, %v557
    %v559 = vsub.f32 2.0, %v558
    %v560 = vmul.f32 %v557, %v559
    %v561 = vsub.f32 1.0, %v560
    %562 = vst [vmem:[#allocation7] sm:$0xff] %v561
    // Predicated region
    $region18: #{tpu_custom_call.1} parent=1 // pred_check
      _
    $region19: #{tpu_custom_call.1} parent=1 // pred_check_branch
      %564 = sbr.rel (0) target = $region21
    $region20: #{tpu_custom_call.1} parent=1 // pred_region
      %s566 = ssub.s32 128, 128
      %567 = vsyncadd [#allocation4], %s566
      %s569 = sshll.u32 [#allocation7], 4
      %s570 = int_to_ptr.vmem [resolvable:$true] %s569
      %572 = dma.vmem_to_hbm [thread:$0]  %s570, 128, %s2, [#allocation4]
    $region21: #{tpu_custom_call.1} parent=1 // pred_fallthru
      _
    // Predicated region
    $region22: #{tpu_custom_call.1} parent=1 // pred_check
      _
    $region23: #{tpu_custom_call.1} parent=1 // pred_check_branch
      %574 = sbr.rel (0) target = $region25
    $region24: #{tpu_custom_call.1} parent=1 // pred_region
      %575 = dma.done [#allocation4], 128
    $region25: #{tpu_custom_call.1} parent=1 // pred_fallthru
      _
    %576 = vsyncpa [#allocation3], 1
    %577 = vsyncpa [#allocation6], 1
    %578 = vsyncpa [#allocation4], 1

</llo_original>
